<compile_context>
chip_gen: v7x
topology: tpu7x:2x2x1
jax: 0.10.0
libtpu: 0.0.40
codegen_flags: <defaults>
</compile_context>

<pallas_src>
import jax
import jax.numpy as jnp
from jax.experimental import pallas as pl
from jax.experimental.pallas import tpu as pltpu


def _kv_fused_kernel(p_ref, w_ref, o_ref):
    # p_ref: (K, nb*HWp)    im2col patch slab (+ ones row) for this batch block
    # w_ref: (Cout, K)      fused [key; value | bias] weights
    # o_ref: (Cout, nb*HWp) fused output; split / reshaped to NCHW in wrapper
    o_ref[...] = jnp.dot(
        w_ref[...], p_ref[...], preferred_element_type=jnp.float32
    ).astype(o_ref.dtype)


def _vmem_capacity_bytes():
    try:
        cap = int(pltpu.get_tpu_info().vmem_capacity_bytes)
        if cap > 0:
            return cap
    except Exception:
        pass
    return 64 * 1024 * 1024  # conservative fallback: v7x per-TensorCore VMEM


def _choose_block_n(n, k_dim, cout, hw_pad, itemsize):
    """Images per grid step + vmem limit, sized against this chip's VMEM."""
    vmem_cap = _vmem_capacity_bytes()
    budget = int(vmem_cap * 0.45)          # headroom for compiler scratch etc.
    per_image = 2 * (k_dim + cout) * hw_pad * itemsize  # double-buffered in+out
    const = 2 * cout * k_dim * itemsize                 # weights block (x2 bufs)
    nb = max(1, (budget - const) // per_image)
    nb = int(min(nb, n))
    # NOTE: no forced multi-step split — v5e/v6e are single-TensorCore, so
    # extra grid steps are pure per-step overhead; big batches exceed the
    # VMEM cap above and naturally produce >1 ("parallel") step for v7x.
    footprint = const + nb * per_image
    vmem_limit = int(min(max(footprint + (2 << 20), 16 << 20), vmem_cap))
    return nb, vmem_limit


def key_value_forward(x_nchw, wk_oihw, bk, wv_oihw, bv, operand_dtype=None):
    """Equivalent of KeyValue.forward(x) for NCHW input x.

    Returns (key, value), both NCHW, matching the PyTorch module.
    Set operand_dtype=jnp.bfloat16 for large shapes on v6e/v7x (f32 accumulate).
    """
    N, Cin, H, W = x_nchw.shape
    Kd = wk_oihw.shape[0]
    Vd = wv_oihw.shape[0]
    Cout = Kd + Vd
    HW = H * W
    HWp = ((HW + 127) // 128) * 128        # lane-dense stores need a %128 width
    Kc = Cin * 9 + 1                       # 9 im2col taps + ones row (bias)

    cdtype = jnp.dtype(operand_dtype) if operand_dtype is not None else x_nchw.dtype
    out_dtype = x_nchw.dtype

    nb, vmem_limit = _choose_block_n(N, Kc, Cout, HWp, cdtype.itemsize)
    n_steps = pl.cdiv(N, nb)
    Np = n_steps * nb                      # batch padded to a multiple of nb

    # ---- fused weights: [Key; Value] rows, contraction index (ci*9 + dh*3 + dw),
    # plus a trailing bias column that pairs with the ones row of the slab.
    w_f = jnp.concatenate(
        [wk_oihw.reshape(Kd, Cin * 9), wv_oihw.reshape(Vd, Cin * 9)], axis=0)
    b_f = jnp.concatenate([bk, bv], axis=0).reshape(Cout, 1)
    w_f = jnp.concatenate([w_f, b_f], axis=1).astype(cdtype)       # (Cout, Kc)

    # ---- im2col patch slab in (K, N*HWp) layout (lane index = n*HWp + hw) ----
    # TODO(synk): for large Cin*H*W, skip the 9x im2col slab and accumulate the
    # 9 shifted taps inside the kernel from a single padded-image DMA instead.
    x_pad = jnp.pad(x_nchw, ((0, 0), (0, 0), (1, 1), (1, 1)))
    x_pad = jnp.transpose(x_pad, (1, 0, 2, 3))            # (Cin, N, H+2, W+2)
    taps = [x_pad[:, :, dh:dh + H, dw:dw + W]
            for dh in range(3) for dw in range(3)]
    patches = jnp.stack(taps, axis=1).reshape(Cin * 9, N, HW)
    patches = jnp.pad(patches, ((0, 0), (0, Np - N), (0, HWp - HW)))
    ones = jnp.ones((1, Np, HWp), patches.dtype)
    patches = jnp.concatenate([patches, ones], axis=0)    # (Kc, Np, HWp)
    patches = patches.reshape(Kc, Np * HWp).astype(cdtype)

    lanes = nb * HWp
    cost = pl.CostEstimate(
        flops=2 * Cout * Kc * Np * HWp,
        transcendentals=0,
        bytes_accessed=(Kc * Np * HWp + Cout * Kc) * cdtype.itemsize
        + Cout * Np * HWp * jnp.dtype(out_dtype).itemsize)

    out = pl.pallas_call(
        _kv_fused_kernel,
        out_shape=jax.ShapeDtypeStruct((Cout, Np * HWp), out_dtype),
        grid=(n_steps,),
        in_specs=[
            pl.BlockSpec((Kc, lanes), lambda n: (0, n)),
            pl.BlockSpec((Cout, Kc), lambda n: (0, 0)),
        ],
        out_specs=pl.BlockSpec((Cout, lanes), lambda n: (0, n)),
        compiler_params=pltpu.CompilerParams(
            dimension_semantics=("parallel",),
            vmem_limit_bytes=vmem_limit),
        cost_estimate=cost,
    )(patches, w_f)

    # (Cout, Np*HWp) -> (N, Cout, H, W): only a small output-side transpose.
    out = out.reshape(Cout, Np, HWp)[:, :N, :HW]
    out = jnp.transpose(out, (1, 0, 2)).reshape(N, Cout, H, W)
    return out[:, :Kd], out[:, Kd:]


def _reference(x_nchw, wk_oihw, bk, wv_oihw, bv):
    dn = jax.lax.conv_dimension_numbers(
        x_nchw.shape, wk_oihw.shape, ('NCHW', 'OIHW', 'NCHW'))
    key = jax.lax.conv_general_dilated(
        x_nchw, wk_oihw, window_strides=(1, 1), padding=((1, 1), (1, 1)),
        dimension_numbers=dn) + bk.reshape(1, -1, 1, 1)
    val = jax.lax.conv_general_dilated(
        x_nchw, wv_oihw, window_strides=(1, 1), padding=((1, 1), (1, 1)),
        dimension_numbers=dn) + bv.reshape(1, -1, 1, 1)
    return key, val


if __name__ == "__main__":
    # Small shapes consistent with the module: indim=4, keydim=8, valdim=16.
    N, Cin, H, W = 2, 4, 16, 16
    Kd, Vd = 8, 16

    root = jax.random.PRNGKey(0)
    kx, kwk, kbk, kwv, kbv = jax.random.split(root, 5)

    # Deterministic parameter init (PyTorch conv default: uniform +-1/sqrt(fan_in)).
    fan_in = Cin * 3 * 3
    bound = 1.0 / (fan_in ** 0.5)
    x = jax.random.normal(kx, (N, Cin, H, W), jnp.float32)
    wk = jax.random.uniform(kwk, (Kd, Cin, 3, 3), jnp.float32, -bound, bound)
    bk = jax.random.uniform(kbk, (Kd,), jnp.float32, -bound, bound)
    wv = jax.random.uniform(kwv, (Vd, Cin, 3, 3), jnp.float32, -bound, bound)
    bv = jax.random.uniform(kbv, (Vd,), jnp.float32, -bound, bound)

    key, val = jax.jit(key_value_forward)(x, wk, bk, wv, bv)
    jax.block_until_ready((key, val))

    key_ref, val_ref = _reference(x, wk, bk, wv, bv)
    assert key.shape == (N, Kd, H, W) and val.shape == (N, Vd, H, W)
    assert jnp.allclose(key, key_ref, atol=1e-4, rtol=1e-4)
    assert jnp.allclose(val, val_ref, atol=1e-4, rtol=1e-4)

    print("KERNEL_OK")
</pallas_src>

<mosaic_0001>
module attributes {stable_mosaic.version = 11 : i64} {
  func.func @_kv_fused_kernel(%arg0: i32, %arg1: memref<37x512xf32, #tpu.memory_space<vmem>>, %arg2: memref<24x37xf32, #tpu.memory_space<vmem>>, %arg3: memref<24x512xf32, #tpu.memory_space<vmem>>) attributes {dimension_semantics = [#tpu.dimension_semantics<parallel>], iteration_bounds = array<i64: 1>, scalar_prefetch = 0 : i64, scratch_operands = 0 : i64, tpu.core_type = #tpu.core_type<tc>, window_params = [{transform_indices = @transform_0, window_bounds = array<i64: 37, 512>}, {pipeline_mode = #tpu.pipeline_mode<synchronous>, transform_indices = @transform_1, window_bounds = array<i64: 24, 37>}, {transform_indices = @transform_2, window_bounds = array<i64: 24, 512>}]} {
    %c0 = arith.constant 0 : index
    %c0_0 = arith.constant 0 : index
    %0 = vector.load %arg2[%c0, %c0_0] : memref<24x37xf32, #tpu.memory_space<vmem>>, vector<24x37xf32>
    %c0_1 = arith.constant 0 : index
    %c0_2 = arith.constant 0 : index
    %1 = vector.load %arg1[%c0_1, %c0_2] : memref<37x512xf32, #tpu.memory_space<vmem>>, vector<37x512xf32>
    %cst = arith.constant dense<0.000000e+00> : vector<24x512xf32>
    %2 = tpu.matmul %0, %1, %cst {dimension_numbers = #tpu.dot_dimension_numbers<[1], [0], [0], [1], [0, 0, 1, 1], [], []>} : vector<24x37xf32>, vector<37x512xf32>, vector<24x512xf32> -> vector<24x512xf32>
    %c0_3 = arith.constant 0 : index
    %c0_4 = arith.constant 0 : index
    %3 = vector.load %arg3[%c0_3, %c0_4] : memref<24x512xf32, #tpu.memory_space<vmem>>, vector<24x512xf32>
    tpu.vector_store %arg3[%c0_3, %c0_4], %2 {strides = array<i32>} : memref<24x512xf32, #tpu.memory_space<vmem>>, vector<24x512xf32>,
    return
  }
  func.func @transform_0(%arg0: i32) -> (i32, i32) {
    %c0_i32 = arith.constant 0 : i32
    %c0_i32_0 = arith.constant 0 : i32
    return %c0_i32, %arg0 : i32, i32
  }
  func.func @transform_1(%arg0: i32) -> (i32, i32) {
    %c0_i32 = arith.constant 0 : i32
    %c0_i32_0 = arith.constant 0 : i32
    %c0_i32_1 = arith.constant 0 : i32
    return %c0_i32, %c0_i32_0 : i32, i32
  }
  func.func @transform_2(%arg0: i32) -> (i32, i32) {
    %c0_i32 = arith.constant 0 : i32
    %c0_i32_0 = arith.constant 0 : i32
    return %c0_i32, %arg0 : i32, i32
  }
}

</mosaic_0001>

<llo_original>
// kernel: key_value_forward.1
$region0: #{key_value_forward.1}
  #allocation0 [shape = 'u32[]', space=smem, size = 0x4, offset = 0x4, fixed_abs, tag = 'smem constant byte address 0x4 - core index']
  #allocation1 [shape = 'u32[144,128]{1,0:T(1,128)}', space=vmem, size = 0x12000, scoped, tag = 'internal scratch']
  %s0 = inlined_call_operand.vmem [shape: f32[37,512], index: 0, kind: input, shape index: {}]
  %s1 = inlined_call_operand.vmem [shape: f32[24,37], index: 1, kind: input, shape index: {}]
  %s2 = inlined_call_operand.vmem [shape: f32[24,512], index: 2, kind: output, shape index: {}]
  %s3 = sld [smem:[#allocation0]]
  $region18: #{key_value_forward.1} parent=0
    _
  %s5 = ssub.s32 1, %s3
  %s6 = scalar_select 0, %s5, %s3
  // Predicated region
  $region2: #{key_value_forward.1} parent=0 // pred_check
    _
  $region3: #{key_value_forward.1} parent=0 // pred_check_branch
    %8 = sbr.rel (0) target = $region5
  $region4: #{key_value_forward.1} parent=0 // pred_region
    _
  $region5: #{key_value_forward.1} parent=0 // pred_fallthru
    _
  // Predicated region
  $region6: #{key_value_forward.1} parent=0 // pred_check
    _
  $region7: #{key_value_forward.1} parent=0 // pred_check_branch
    %10 = sbr.rel (0) target = $region9
  $region8: #{key_value_forward.1} parent=0 // pred_region
    _
  $region9: #{key_value_forward.1} parent=0 // pred_fallthru
    _
  %v11 = vld [vmem:[%s1] sm:$0xff]
  %v12 = vld [vmem:[%s1 + $0x8] sm:$0xff]
  %v13 = vld [vmem:[%s1 + $0x10] sm:$0xff]
  %v14 = vld [vmem:[%s0] sm:$0xff]
  %v15 = vld [vmem:[%s0 + $0x8] sm:$0xff]
  %v16 = vld [vmem:[%s0 + $0x10] sm:$0xff]
  %v17 = vld [vmem:[%s0 + $0x18] sm:$0xff]
  %v18 = vld [vmem:[%s0 + $0x20] sm:$0xff]
  %v19 = vld [vmem:[%s0 + $0x28] sm:$0xff]
  %v20 = vld [vmem:[%s0 + $0x30] sm:$0xff]
  %v21 = vld [vmem:[%s0 + $0x38] sm:$0xff]
  %v22 = vld [vmem:[%s0 + $0x40] sm:$0xff]
  %v23 = vld [vmem:[%s0 + $0x48] sm:$0xff]
  %v24 = vld [vmem:[%s0 + $0x50] sm:$0xff]
  %v25 = vld [vmem:[%s0 + $0x58] sm:$0xff]
  %v26 = vld [vmem:[%s0 + $0x60] sm:$0xff]
  %v27 = vld [vmem:[%s0 + $0x68] sm:$0xff]
  %v28 = vld [vmem:[%s0 + $0x70] sm:$0xff]
  %v29 = vld [vmem:[%s0 + $0x78] sm:$0xff]
  %v30 = vld [vmem:[%s0 + $0x80] sm:$0x1f]
  %v31 = vld [vmem:[%s0 + $0x88] sm:$0x1f]
  %v32 = vld [vmem:[%s0 + $0x90] sm:$0x1f]
  %v33 = vld [vmem:[%s0 + $0x98] sm:$0x1f]
  %vm34 = vcmask 302080
  %v36 = vsel %vm34, %v11, 0
  %v39 = vsel %vm34, %v12, 0
  %v42 = vsel %vm34, %v13, 0
  %vm44 = vcmask 1044480
  %v46 = vsel %vm44, %v30, 0
  %v49 = vsel %vm44, %v31, 0
  %v52 = vsel %vm44, %v32, 0
  %v55 = vsel %vm44, %v33, 0
  %57 = vmatprep.subr.mxu0 %v15
  %58 = vmatpush1.msra.mxu0 %v14
  %59 = vmatprep.subr.mxu0 %v19
  %60 = vmatpush1.msra.mxu0 %v18
  %61 = vmatprep.subr.mxu0 %v23
  %62 = vmatpush1.msra.mxu0 %v22
  %63 = vmatprep.subr.mxu0 %v27
  %64 = vmatpush1.msra.mxu0 %v26
  %65 = vmatprep.subr.mxu0 %v49
  %66 = vmatpush1.msra.mxu0 %v46
  %67 = vmatprep.subr.mxu0 0.0
  %68 = vmatpush1.msra.mxu0 0.0
  %69 = vmatprep.subr.mxu0 0.0
  %70 = vmatpush1.msra.mxu0 0.0
  %71 = vmatprep.subr.mxu0 0.0
  %72 = vmatpush1.msra.mxu0 0.0
  %73 = vmatprep.subr.mxu0 0.0
  %74 = vmatpush1.msra.mxu0 0.0
  %75 = vmatprep.subr.mxu0 0.0
  %76 = vmatpush1.msra.mxu0 0.0
  %77 = vmatprep.subr.mxu0 0.0
  %78 = vmatpush1.msra.mxu0 0.0
  %79 = vmatprep.subr.mxu0 0.0
  %80 = vmatpush1.msra.mxu0 0.0
  %81 = vmatprep.subr.mxu0 0.0
  %82 = vmatpush1.msra.mxu0 0.0
  %83 = vmatprep.subr.mxu0 0.0
  %84 = vmatpush1.msra.mxu0 0.0
  %85 = vmatprep.subr.mxu0 0.0
  %86 = vmatpush1.msra.mxu0 0.0
  %87 = vmatprep.subr.mxu0 0.0
  %88 = vmatpush1.msra.mxu0 0.0
  %89 = vmatprep.subr.mxu0 0.0
  %90 = vmatpush1.msra.mxu0 0.0
  %91 = vmatprep.subr.mxu0 0.0
  %92 = vmatpush1.msra.mxu0 0.0
  %93 = vmatprep.subr.mxu0 0.0
  %94 = vmatpush1.msra.mxu0 0.0
  %95 = vmatprep.subr.mxu0 0.0
  %96 = vmatpush1.msra.mxu0 0.0
  %97 = vmatprep.subr.mxu0 0.0
  %98 = vmatpush1.msra.mxu0 0.0
  %99 = vmatprep.subr.mxu0 0.0
  %100 = vmatpush1.msra.mxu0 0.0
  %101 = vmatprep.subr.mxu0 0.0
  %102 = vmatpush1.msra.mxu0 0.0
  %103 = vmatprep.subr.mxu0 0.0
  %104 = vmatpush1.msra.mxu0 0.0
  %105 = vmatprep.subr.mxu0 0.0
  %106 = vmatpush1.msra.mxu0 0.0
  %107 = vmatprep.subr.mxu0 0.0
  %108 = vmatpush1.msra.mxu0 0.0
  %109 = vmatprep.subr.mxu0 0.0
  %110 = vmatpush1.msra.mxu0 0.0
  %111 = vmatprep.subr.mxu0 0.0
  %112 = vmatpush1.msra.mxu0 0.0
  %113 = vmatprep.subr.mxu0 0.0
  %114 = vmatpush1.msra.mxu0 0.0
  %115 = vmatprep.subr.mxu0 0.0
  %116 = vmatpush1.msra.mxu0 0.0
  %117 = vmatprep.subr.mxu0 0.0
  %118 = vmatpush1.msra.mxu0 0.0
  %119 = vmatprep.subr.mxu0 0.0
  %120 = vmatpush1.msra.mxu0 0.0
  %121 = vmatprep.mubr.f32.mxu0 0.0
  %122 = vmatmul.mubr.f32.gmra.mrb[0].mxu0 %v36
  %v123 = vpop.f32.mrb[0].mxu0
  %v124 = vadd.f32 0.0, %v123
  %v125 = vpop.f32.mrb[0].mxu0
  %v126 = vadd.f32 0.0, %v125
  %127 = vmatprep.mubr.f32.mxu0 0.0
  %128 = vmatmul.mubr.f32.gmra.mrb[0].mxu0 %v39
  %v129 = vpop.f32.mrb[0].mxu0
  %v130 = vadd.f32 0.0, %v129
  %v131 = vpop.f32.mrb[0].mxu0
  %v132 = vadd.f32 0.0, %v131
  %133 = vmatprep.mubr.f32.mxu0 0.0
  %134 = vmatmul.mubr.f32.gmra.mrb[0].mxu0 %v42
  %v135 = vpop.f32.mrb[0].mxu0
  %v136 = vadd.f32 0.0, %v135
  %v137 = vpop.f32.mrb[0].mxu0
  %v138 = vadd.f32 0.0, %v137
  %139 = vdwg.mxu0
  %140 = vmatprep.subr.mxu0 %v17
  %141 = vmatpush1.msra.mxu0 %v16
  %142 = vmatprep.subr.mxu0 %v21
  %143 = vmatpush1.msra.mxu0 %v20
  %144 = vmatprep.subr.mxu0 %v25
  %145 = vmatpush1.msra.mxu0 %v24
  %146 = vmatprep.subr.mxu0 %v29
  %147 = vmatpush1.msra.mxu0 %v28
  %148 = vmatprep.subr.mxu0 %v55
  %149 = vmatpush1.msra.mxu0 %v52
  %150 = vmatprep.subr.mxu0 0.0
  %151 = vmatpush1.msra.mxu0 0.0
  %152 = vmatprep.subr.mxu0 0.0
  %153 = vmatpush1.msra.mxu0 0.0
  %154 = vmatprep.subr.mxu0 0.0
  %155 = vmatpush1.msra.mxu0 0.0
  %156 = vmatprep.subr.mxu0 0.0
  %157 = vmatpush1.msra.mxu0 0.0
  %158 = vmatprep.subr.mxu0 0.0
  %159 = vmatpush1.msra.mxu0 0.0
  %160 = vmatprep.subr.mxu0 0.0
  %161 = vmatpush1.msra.mxu0 0.0
  %162 = vmatprep.subr.mxu0 0.0
  %163 = vmatpush1.msra.mxu0 0.0
  %164 = vmatprep.subr.mxu0 0.0
  %165 = vmatpush1.msra.mxu0 0.0
  %166 = vmatprep.subr.mxu0 0.0
  %167 = vmatpush1.msra.mxu0 0.0
  %168 = vmatprep.subr.mxu0 0.0
  %169 = vmatpush1.msra.mxu0 0.0
  %170 = vmatprep.subr.mxu0 0.0
  %171 = vmatpush1.msra.mxu0 0.0
  %172 = vmatprep.subr.mxu0 0.0
  %173 = vmatpush1.msra.mxu0 0.0
  %174 = vmatprep.subr.mxu0 0.0
  %175 = vmatpush1.msra.mxu0 0.0
  %176 = vmatprep.subr.mxu0 0.0
  %177 = vmatpush1.msra.mxu0 0.0
  %178 = vmatprep.subr.mxu0 0.0
  %179 = vmatpush1.msra.mxu0 0.0
  %180 = vmatprep.subr.mxu0 0.0
  %181 = vmatpush1.msra.mxu0 0.0
  %182 = vmatprep.subr.mxu0 0.0
  %183 = vmatpush1.msra.mxu0 0.0
  %184 = vmatprep.subr.mxu0 0.0
  %185 = vmatpush1.msra.mxu0 0.0
  %186 = vmatprep.subr.mxu0 0.0
  %187 = vmatpush1.msra.mxu0 0.0
  %188 = vmatprep.subr.mxu0 0.0
  %189 = vmatpush1.msra.mxu0 0.0
  %190 = vmatprep.subr.mxu0 0.0
  %191 = vmatpush1.msra.mxu0 0.0
  %192 = vmatprep.subr.mxu0 0.0
  %193 = vmatpush1.msra.mxu0 0.0
  %194 = vmatprep.subr.mxu0 0.0
  %195 = vmatpush1.msra.mxu0 0.0
  %196 = vmatprep.subr.mxu0 0.0
  %197 = vmatpush1.msra.mxu0 0.0
  %198 = vmatprep.subr.mxu0 0.0
  %199 = vmatpush1.msra.mxu0 0.0
  %200 = vmatprep.subr.mxu0 0.0
  %201 = vmatpush1.msra.mxu0 0.0
  %202 = vmatprep.subr.mxu0 0.0
  %203 = vmatpush1.msra.mxu0 0.0
  %204 = vmatprep.mubr.f32.mxu0 0.0
  %205 = vmatmul.mubr.f32.gmra.mrb[0].mxu0 %v36
  %v206 = vpop.f32.mrb[0].mxu0
  %v207 = vadd.f32 0.0, %v206
  %v208 = vpop.f32.mrb[0].mxu0
  %v209 = vadd.f32 0.0, %v208
  %210 = vmatprep.mubr.f32.mxu0 0.0
  %211 = vmatmul.mubr.f32.gmra.mrb[0].mxu0 %v39
  %v212 = vpop.f32.mrb[0].mxu0
  %v213 = vadd.f32 0.0, %v212
  %v214 = vpop.f32.mrb[0].mxu0
  %v215 = vadd.f32 0.0, %v214
  %216 = vmatprep.mubr.f32.mxu0 0.0
  %217 = vmatmul.mubr.f32.gmra.mrb[0].mxu0 %v42
  %v218 = vpop.f32.mrb[0].mxu0
  %v219 = vadd.f32 0.0, %v218
  %v220 = vpop.f32.mrb[0].mxu0
  %v221 = vadd.f32 0.0, %v220
  %222 = vdwg.mxu0
  %223 = vst [vmem:[%s2] sm:$0xff] %v124
  %224 = vst [vmem:[%s2 + $0x8] sm:$0xff] %v126
  %225 = vst [vmem:[%s2 + $0x10] sm:$0xff] %v207
  %226 = vst [vmem:[%s2 + $0x18] sm:$0xff] %v209
  %227 = vst [vmem:[%s2 + $0x20] sm:$0xff] %v130
  %228 = vst [vmem:[%s2 + $0x28] sm:$0xff] %v132
  %229 = vst [vmem:[%s2 + $0x30] sm:$0xff] %v213
  %230 = vst [vmem:[%s2 + $0x38] sm:$0xff] %v215
  %231 = vst [vmem:[%s2 + $0x40] sm:$0xff] %v136
  %232 = vst [vmem:[%s2 + $0x48] sm:$0xff] %v138
  %233 = vst [vmem:[%s2 + $0x50] sm:$0xff] %v219
  %234 = vst [vmem:[%s2 + $0x58] sm:$0xff] %v221
  // Predicated region
  $region10: #{key_value_forward.1} parent=0 // pred_check
    _
  $region11: #{key_value_forward.1} parent=0 // pred_check_branch
    %236 = sbr.rel (0) target = $region13
  $region12: #{key_value_forward.1} parent=0 // pred_region
    _
  $region13: #{key_value_forward.1} parent=0 // pred_fallthru
    _
  // Predicated region
  $region14: #{key_value_forward.1} parent=0 // pred_check
    _
  $region15: #{key_value_forward.1} parent=0 // pred_check_branch
    %238 = sbr.rel (0) target = $region17
  $region16: #{key_value_forward.1} parent=0 // pred_region
    _
  $region17: #{key_value_forward.1} parent=0 // pred_fallthru
    _

</llo_original>
